<compile_context>
chip_gen: v5e
topology: v5e:2x2
jax: 0.10.0
libtpu: 0.0.40
codegen_flags: <defaults>
</compile_context>

<pallas_src>
import numpy as np
import jax
import jax.numpy as jnp
from jax.experimental import pallas as pl
from jax.experimental.pallas import tpu as pltpu


def _round_up(n, m):
    return ((n + m - 1) // m) * m


# ----------------------------------------------------------------------------
# Kernels
# ----------------------------------------------------------------------------
def _gate_kernel_plain(x1_ref, x2_ref, v1_ref, v2_ref, c_ref, out_ref):
    # x1/x2: (TM, D) in caller dtype; single upcast (v5e has no bf16 VPU/EUP).
    x1 = x1_ref[...].astype(jnp.float32)
    x2 = x2_ref[...].astype(jnp.float32)
    # gate logit = <x1, v1> + <x2, v2> + c   (VPU mul + XLU lane reduce, no MXU)
    logit = jnp.sum(x1 * v1_ref[...] + x2 * v2_ref[...], axis=-1, keepdims=True)
    gate = jax.nn.sigmoid(logit + c_ref[0])                   # EUP, (TM, 1)
    out_ref[...] = (x2 + gate * (x1 - x2)).astype(out_ref.dtype)


def _gate_kernel_packed(x1_ref, x2_ref, v1_ref, v2_ref, seg_ref, c_ref, out_ref):
    # Lane-dense layout: G = 128//D logical rows packed into each 128-lane row.
    x1 = x1_ref[...].astype(jnp.float32)                      # (TM, 128)
    x2 = x2_ref[...].astype(jnp.float32)
    p = x1 * v1_ref[...] + x2 * v2_ref[...]                   # (TM, 128)
    # Segmented lane reduce via the otherwise-idle MXU: block-diagonal ones
    # matrix broadcasts each D-lane group's logit to all lanes of the group.
    logit = jnp.dot(p, seg_ref[...], preferred_element_type=jnp.float32)
    gate = jax.nn.sigmoid(logit + c_ref[0])                   # (TM, 128)
    out_ref[...] = (x2 + gate * (x1 - x2)).astype(out_ref.dtype)


# ----------------------------------------------------------------------------
# One-time parameter preparation (fold Linear2 ∘ Linear1, pre-tile lane vectors)
# ----------------------------------------------------------------------------
def fold_gate_params(params, input_dim):
    """params in (in, out) layout: w1 (2D, D), b1 (D,), w2 (D, 1), b2 (1,).
    Exact fold because there is no nonlinearity between the two Linears."""
    D = input_dim
    W1 = params["w1"].astype(jnp.float32)
    b1 = params["b1"].astype(jnp.float32)
    W2 = params["w2"].astype(jnp.float32)
    b2 = params["b2"].astype(jnp.float32)

    v1 = (W1[:D] @ W2).reshape(1, D)          # (1, D)
    v2 = (W1[D:] @ W2).reshape(1, D)          # (1, D)
    c = (b1 @ W2 + b2).reshape(1)             # (1,)  -> SMEM scalar

    folded = {"v1": v1, "v2": v2, "c": c, "D": D}
    if D < 128 and 128 % D == 0:
        G = 128 // D
        folded["v1_packed"] = jnp.tile(v1, (1, G))            # (1, 128)
        folded["v2_packed"] = jnp.tile(v2, (1, G))            # (1, 128)
        grp = jnp.arange(128, dtype=jnp.int32) // D
        folded["seg"] = (grp[:, None] == grp[None, :]).astype(jnp.float32)  # (128,128)
    return folded


# ----------------------------------------------------------------------------
# Row-tile sizing: ~2 MiB streamed blocks, >= 2 grid steps when possible
# ----------------------------------------------------------------------------
def _pick_tm(n_rows, row_bytes, target_block_bytes):
    if n_rows <= 8:
        return max(int(n_rows), 1)            # block == full dim, grid of 1
    tm = max(8, (target_block_bytes // row_bytes) // 8 * 8)
    # keep at least 2 grid steps so the "parallel" axis shards across v7x's 2 TCs
    tm = min(tm, _round_up(pl.cdiv(n_rows, 2), 8))
    return int(tm)


def _vmem_limit(block_bytes):
    # 3 streamed arrays x 2 buffers + f32 temps + slack; capped well under
    # v7x's 64 MiB physical VMEM (and above v5e's 16 MiB scoped default).
    return int(min(48 << 20, max(16 << 20, 12 * block_bytes + (8 << 20))))


# ----------------------------------------------------------------------------
# Forward wrapper
# ----------------------------------------------------------------------------
def gate_layer_forward(input1, input2, folded, *, target_block_bytes=2 << 20):
    assert input1.shape == input2.shape and input1.dtype == input2.dtype
    D = input1.shape[-1]
    assert folded["D"] == D
    lead = input1.shape[:-1]
    N = int(np.prod(lead)) if lead else 1
    dtype = input1.dtype
    itemsize = jnp.dtype(dtype).itemsize

    x1 = input1.reshape(N, D)                 # free reshapes; stream caller dtype
    x2 = input2.reshape(N, D)

    smem_spec = pl.BlockSpec(memory_space=pltpu.MemorySpace.SMEM)

    use_packed = ("seg" in folded) and ((N * D) % 128 == 0)

    if use_packed:
        n_rows = (N * D) // 128
        x1p = x1.reshape(n_rows, 128)
        x2p = x2.reshape(n_rows, 128)

        tm = _pick_tm(n_rows, 128 * itemsize, target_block_bytes)
        grid = (pl.cdiv(n_rows, tm),)
        row_spec = pl.BlockSpec((tm, 128), lambda i: (i, 0))
        vec_spec = pl.BlockSpec((1, 128), lambda i: (0, 0))
        seg_spec = pl.BlockSpec((128, 128), lambda i: (0, 0))

        out = pl.pallas_call(
            _gate_kernel_packed,
            out_shape=jax.ShapeDtypeStruct((n_rows, 128), dtype),
            grid_spec=pltpu.PrefetchScalarGridSpec(
                num_scalar_prefetch=0,
                grid=grid,
                in_specs=[row_spec, row_spec, vec_spec, vec_spec, seg_spec,
                          smem_spec],
                out_specs=row_spec,
            ),
            compiler_params=pltpu.CompilerParams(
                dimension_semantics=("parallel",),
                vmem_limit_bytes=_vmem_limit(tm * 128 * itemsize)),
        )(x1p, x2p, folded["v1_packed"], folded["v2_packed"], folded["seg"],
          folded["c"])
        return out.reshape(lead + (D,))

    # Plain path: D >= 128 (lane-dense if D % 128 == 0) or D not dividing 128.
    # TODO(synk): for D that neither divides nor is a multiple of 128, output
    # stores are lane-masked; a lane-repack would recover more bandwidth.
    tm = _pick_tm(N, D * itemsize, target_block_bytes)
    grid = (pl.cdiv(N, tm),)
    row_spec = pl.BlockSpec((tm, D), lambda i: (i, 0))
    vec_spec = pl.BlockSpec((1, D), lambda i: (0, 0))

    out = pl.pallas_call(
        _gate_kernel_plain,
        out_shape=jax.ShapeDtypeStruct((N, D), dtype),
        grid_spec=pltpu.PrefetchScalarGridSpec(
            num_scalar_prefetch=0,
            grid=grid,
            in_specs=[row_spec, row_spec, vec_spec, vec_spec, smem_spec],
            out_specs=row_spec,
        ),
        compiler_params=pltpu.CompilerParams(
            dimension_semantics=("parallel",),
            vmem_limit_bytes=_vmem_limit(tm * D * itemsize)),
    )(x1, x2, folded["v1"], folded["v2"], folded["c"])
    return out.reshape(lead + (D,))


# ----------------------------------------------------------------------------
# Pure-JAX reference (literal translation of the PyTorch module)
# ----------------------------------------------------------------------------
def reference_forward(input1, input2, params):
    W1, b1, W2, b2 = params["w1"], params["b1"], params["w2"], params["b2"]
    norm = jnp.concatenate([input1, input2], axis=-1) @ W1 + b1
    gate = jax.nn.sigmoid(norm @ W2 + b2)
    return gate * input1 + (1.0 - gate) * input2


# ----------------------------------------------------------------------------
# Deterministic parameter construction (PyTorch-Linear-style uniform init)
# ----------------------------------------------------------------------------
def init_params(key, D):
    k1, k2, k3, k4 = jax.random.split(key, 4)
    lim1 = 1.0 / float(np.sqrt(2 * D))
    lim2 = 1.0 / float(np.sqrt(D))
    return {
        "w1": jax.random.uniform(k1, (2 * D, D), jnp.float32, -lim1, lim1),
        "b1": jax.random.uniform(k2, (D,), jnp.float32, -lim1, lim1),
        "w2": jax.random.uniform(k3, (D, 1), jnp.float32, -lim2, lim2),
        "b2": jax.random.uniform(k4, (1,), jnp.float32, -lim2, lim2),
    }


if __name__ == "__main__":
    # small shapes consistent with the module: batch=2, seq=8, hidden=32
    B, S, D = 2, 8, 32
    key = jax.random.PRNGKey(0)
    kp, k1, k2 = jax.random.split(key, 3)
    params = init_params(kp, D)
    input1 = jax.random.normal(k1, (B, S, D), jnp.float32)
    input2 = jax.random.normal(k2, (B, S, D), jnp.float32)

    folded = fold_gate_params(params, D)          # one-time weight fold
    out = gate_layer_forward(input1, input2, folded)
    out = jax.block_until_ready(out)

    ref = reference_forward(input1, input2, params)
    ref = jax.block_until_ready(ref)

    np.testing.assert_allclose(np.asarray(out), np.asarray(ref),
                               rtol=1e-4, atol=1e-4)
    assert out.shape == (B, S, D)
    print("KERNEL_OK")
</pallas_src>

<mosaic_0001>
module attributes {stable_mosaic.version = 11 : i64} {
  func.func @_gate_kernel_packed(%arg0: i32, %arg1: memref<4x128xf32, #tpu.memory_space<vmem>>, %arg2: memref<4x128xf32, #tpu.memory_space<vmem>>, %arg3: memref<1x128xf32, #tpu.memory_space<vmem>>, %arg4: memref<1x128xf32, #tpu.memory_space<vmem>>, %arg5: memref<128x128xf32, #tpu.memory_space<vmem>>, %arg6: memref<1xf32, #tpu.memory_space<smem>>, %arg7: memref<4x128xf32, #tpu.memory_space<vmem>>) attributes {dimension_semantics = [#tpu.dimension_semantics<parallel>], iteration_bounds = array<i64: 1>, scalar_prefetch = 0 : i64, scratch_operands = 0 : i64, tpu.core_type = #tpu.core_type<tc>, window_params = [{transform_indices = @transform_0, window_bounds = array<i64: 4, 128>}, {transform_indices = @transform_1, window_bounds = array<i64: 4, 128>}, {pipeline_mode = #tpu.pipeline_mode<synchronous>, transform_indices = @transform_2, window_bounds = array<i64: 1, 128>}, {pipeline_mode = #tpu.pipeline_mode<synchronous>, transform_indices = @transform_3, window_bounds = array<i64: 1, 128>}, {pipeline_mode = #tpu.pipeline_mode<synchronous>, transform_indices = @transform_4, window_bounds = array<i64: 128, 128>}, {transform_indices = @transform_5, window_bounds = array<i64: 1>}, {transform_indices = @transform_6, window_bounds = array<i64: 4, 128>}]} {
    %c0 = arith.constant 0 : index
    %c0_0 = arith.constant 0 : index
    %0 = vector.load %arg1[%c0, %c0_0] : memref<4x128xf32, #tpu.memory_space<vmem>>, vector<4x128xf32>
    %c0_1 = arith.constant 0 : index
    %c0_2 = arith.constant 0 : index
    %1 = vector.load %arg2[%c0_1, %c0_2] : memref<4x128xf32, #tpu.memory_space<vmem>>, vector<4x128xf32>
    %c0_3 = arith.constant 0 : index
    %c0_4 = arith.constant 0 : index
    %2 = vector.load %arg3[%c0_3, %c0_4] : memref<1x128xf32, #tpu.memory_space<vmem>>, vector<1x128xf32>
    %3 = vector.broadcast %2 : vector<1x128xf32> to vector<4x128xf32>
    %4 = arith.mulf %0, %3 : vector<4x128xf32>
    %c0_5 = arith.constant 0 : index
    %c0_6 = arith.constant 0 : index
    %5 = vector.load %arg4[%c0_5, %c0_6] : memref<1x128xf32, #tpu.memory_space<vmem>>, vector<1x128xf32>
    %6 = vector.broadcast %5 : vector<1x128xf32> to vector<4x128xf32>
    %7 = arith.mulf %1, %6 : vector<4x128xf32>
    %8 = arith.addf %4, %7 : vector<4x128xf32>
    %c0_7 = arith.constant 0 : index
    %c0_8 = arith.constant 0 : index
    %9 = vector.load %arg5[%c0_7, %c0_8] : memref<128x128xf32, #tpu.memory_space<vmem>>, vector<128x128xf32>
    %cst = arith.constant dense<0.000000e+00> : vector<4x128xf32>
    %10 = tpu.matmul %8, %9, %cst {dimension_numbers = #tpu.dot_dimension_numbers<[1], [0], [0], [1], [0, 0, 1, 1], [], []>} : vector<4x128xf32>, vector<128x128xf32>, vector<4x128xf32> -> vector<4x128xf32>
    %c0_9 = arith.constant 0 : index
    %11 = memref.load %arg6[%c0_9] : memref<1xf32, #tpu.memory_space<smem>>
    %12 = vector.broadcast %11 : f32 to vector<4x128xf32>
    %13 = arith.addf %10, %12 : vector<4x128xf32>
    %14 = arith.negf %13 : vector<4x128xf32>
    %15 = math.exp %14 : vector<4x128xf32>
    %cst_10 = arith.constant 1.000000e+00 : f32
    %16 = vector.broadcast %cst_10 : f32 to vector<4x128xf32>
    %17 = arith.addf %16, %15 : vector<4x128xf32>
    %18 = arith.divf %16, %17 : vector<4x128xf32>
    %19 = arith.subf %0, %1 : vector<4x128xf32>
    %20 = arith.mulf %18, %19 : vector<4x128xf32>
    %21 = arith.addf %1, %20 : vector<4x128xf32>
    %c0_11 = arith.constant 0 : index
    %c0_12 = arith.constant 0 : index
    %22 = vector.load %arg7[%c0_11, %c0_12] : memref<4x128xf32, #tpu.memory_space<vmem>>, vector<4x128xf32>
    tpu.vector_store %arg7[%c0_11, %c0_12], %21 {strides = array<i32>} : memref<4x128xf32, #tpu.memory_space<vmem>>, vector<4x128xf32>,
    return
  }
  func.func @transform_0(%arg0: i32) -> (i32, i32) {
    %c0_i32 = arith.constant 0 : i32
    %c0_i32_0 = arith.constant 0 : i32
    return %arg0, %c0_i32 : i32, i32
  }
  func.func @transform_1(%arg0: i32) -> (i32, i32) {
    %c0_i32 = arith.constant 0 : i32
    %c0_i32_0 = arith.constant 0 : i32
    return %arg0, %c0_i32 : i32, i32
  }
  func.func @transform_2(%arg0: i32) -> (i32, i32) {
    %c0_i32 = arith.constant 0 : i32
    %c0_i32_0 = arith.constant 0 : i32
    %c0_i32_1 = arith.constant 0 : i32
    return %c0_i32, %c0_i32_0 : i32, i32
  }
  func.func @transform_3(%arg0: i32) -> (i32, i32) {
    %c0_i32 = arith.constant 0 : i32
    %c0_i32_0 = arith.constant 0 : i32
    %c0_i32_1 = arith.constant 0 : i32
    return %c0_i32, %c0_i32_0 : i32, i32
  }
  func.func @transform_4(%arg0: i32) -> (i32, i32) {
    %c0_i32 = arith.constant 0 : i32
    %c0_i32_0 = arith.constant 0 : i32
    %c0_i32_1 = arith.constant 0 : i32
    return %c0_i32, %c0_i32_0 : i32, i32
  }
  func.func @transform_5(%arg0: i32) -> i32 {
    %c0_i32 = arith.constant 0 : i32
    %c0_i32_0 = arith.constant 0 : i32
    return %c0_i32 : i32
  }
  func.func @transform_6(%arg0: i32) -> (i32, i32) {
    %c0_i32 = arith.constant 0 : i32
    %c0_i32_0 = arith.constant 0 : i32
    return %arg0, %c0_i32 : i32, i32
  }
}

</mosaic_0001>

<llo_original>
// kernel: tpu_custom_call.1
$region0: #{tpu_custom_call.1}
  #allocation0 [shape = 'u32[]', space=smem, size = 0x4, offset = 0x4, fixed_abs, tag = 'smem constant byte address 0x4 - core index']
  #allocation1 [shape = 'u32[72,128]{1,0:T(1,128)}', space=vmem, size = 0x9000, scoped, tag = 'internal scratch']
  #allocation2 [shape = 'f32[1]{0:T(128)S(6)}', space=smem, size = 0x200, scoped, tag = 'scoped memory for tpu_custom_call.1']
  %s0 = inlined_call_operand.hbm [shape: f32[4,128], index: 0, kind: input, shape index: {}]
  %s1 = inlined_call_operand.hbm [shape: f32[4,128], index: 1, kind: input, shape index: {}]
  %s2 = inlined_call_operand.vmem [shape: f32[1,128], index: 2, kind: input, shape index: {}]
  %s3 = inlined_call_operand.vmem [shape: f32[1,128], index: 3, kind: input, shape index: {}]
  %s4 = inlined_call_operand.hbm [shape: f32[128,128], index: 4, kind: input, shape index: {}]
  %s5 = inlined_call_operand.<no memory space> [shape: f32[1], index: 5, kind: input, shape index: {}]
  %s6 = inlined_call_operand.hbm [shape: f32[4,128], index: 6, kind: output, shape index: {}]
  %s7 = sld [smem:[#allocation0]]
  $region46: #{tpu_custom_call.1} parent=0
    _
  %s9 = ssub.s32 1, %s7
  %s10 = scalar_select 0, %s9, %s7
  %11 = sst [smem:[#allocation2]] %s5
  $region1: #{tpu_custom_call.1} parent=0
    #allocation3 [shape = 'u8[2048]{0}', space=vmem, size = 0x800, scoped, tag = 'input window, operand 0, single buffered']
    #allocation4 [shape = 's32[1]{0}', space=sflag, size = 0x4, scoped, tag = 'scoped memory for tpu_custom_call.1']
    #allocation5 [shape = 's32[1]{0}', space=sflag, size = 0x4, scoped, tag = 'scoped memory for tpu_custom_call.1']
    #allocation6 [shape = 'u8[2048]{0}', space=vmem, size = 0x800, scoped, tag = 'input window, operand 1, single buffered']
    #allocation7 [shape = 's32[1]{0}', space=sflag, size = 0x4, scoped, tag = 'scoped memory for tpu_custom_call.1']
    #allocation8 [shape = 'u8[65536]{0}', space=vmem, size = 0x10000, scoped, tag = 'input window, operand 4, single buffered']
    #allocation9 [shape = 'u8[2048]{0}', space=vmem, size = 0x800, scoped, tag = 'output window, operand 0, single buffered']
    %12 = vsyncpa [#allocation4], 0
    %13 = vsyncpa [#allocation7], 0
    %14 = vsyncpa [#allocation5], 0
    // Predicated region
    $region2: #{tpu_custom_call.1} parent=1 // pred_check
      _
    $region3: #{tpu_custom_call.1} parent=1 // pred_check_branch
      %16 = sbr.rel (0) target = $region5
    $region4: #{tpu_custom_call.1} parent=1 // pred_region
      %18 = vsyncadd [#allocation4], 0
      %s20 = sshll.u32 %s0, 4
      %s21 = int_to_ptr.hbm [resolvable:$true] %s20
      %s22 = sshll.u32 [#allocation3], 4
      %s23 = int_to_ptr.vmem [resolvable:$true] %s22
      %25 = dma.hbm_to_vmem [thread:$0]  %s21, 64, %s23, [#allocation4]
    $region5: #{tpu_custom_call.1} parent=1 // pred_fallthru
      _
    // Predicated region
    $region6: #{tpu_custom_call.1} parent=1 // pred_check
      _
    $region7: #{tpu_custom_call.1} parent=1 // pred_check_branch
      %27 = sbr.rel (0) target = $region9
    $region8: #{tpu_custom_call.1} parent=1 // pred_region
      %29 = vsyncadd [#allocation7], 0
      %s31 = sshll.u32 %s1, 4
      %s32 = int_to_ptr.hbm [resolvable:$true] %s31
      %s33 = sshll.u32 [#allocation6], 4
      %s34 = int_to_ptr.vmem [resolvable:$true] %s33
      %36 = dma.hbm_to_vmem [thread:$0]  %s32, 64, %s34, [#allocation7]
    $region9: #{tpu_custom_call.1} parent=1 // pred_fallthru
      _
    // Predicated region
    $region10: #{tpu_custom_call.1} parent=1 // pred_check
      _
    $region11: #{tpu_custom_call.1} parent=1 // pred_check_branch
      %38 = sbr.rel (0) target = $region13
    $region12: #{tpu_custom_call.1} parent=1 // pred_region
      _
    $region13: #{tpu_custom_call.1} parent=1 // pred_fallthru
      _
    // Predicated region
    $region14: #{tpu_custom_call.1} parent=1 // pred_check
      _
    $region15: #{tpu_custom_call.1} parent=1 // pred_check_branch
      %40 = sbr.rel (0) target = $region17
    $region16: #{tpu_custom_call.1} parent=1 // pred_region
      _
    $region17: #{tpu_custom_call.1} parent=1 // pred_fallthru
      _
    // Predicated region
    $region18: #{tpu_custom_call.1} parent=1 // pred_check
      _
    $region19: #{tpu_custom_call.1} parent=1 // pred_check_branch
      %42 = sbr.rel (0) target = $region21
    $region20: #{tpu_custom_call.1} parent=1 // pred_region
      %44 = vsyncadd [#allocation7], 0
      %s45 = sshll.u32 %s4, 4
      %s46 = int_to_ptr.hbm [resolvable:$true] %s45
      %s47 = sshll.u32 [#allocation8], 4
      %s48 = int_to_ptr.vmem [resolvable:$true] %s47
      %53 = dma.hbm_to_vmem [thread:$0]  %s46, 2048, %s48, [#allocation7], 128, 128, 8
    $region21: #{tpu_custom_call.1} parent=1 // pred_fallthru
      _
    // Predicated region
    $region22: #{tpu_custom_call.1} parent=1 // pred_check
      _
    $region23: #{tpu_custom_call.1} parent=1 // pred_check_branch
      %55 = sbr.rel (0) target = $region25
    $region24: #{tpu_custom_call.1} parent=1 // pred_region
      _
    $region25: #{tpu_custom_call.1} parent=1 // pred_fallthru
      _
    // Predicated region
    $region26: #{tpu_custom_call.1} parent=1 // pred_check
      _
    $region27: #{tpu_custom_call.1} parent=1 // pred_check_branch
      %57 = sbr.rel (0) target = $region29
    $region28: #{tpu_custom_call.1} parent=1 // pred_region
      %59 = dma.done [#allocation4], 64
    $region29: #{tpu_custom_call.1} parent=1 // pred_fallthru
      _
    // Predicated region
    $region30: #{tpu_custom_call.1} parent=1 // pred_check
      _
    $region31: #{tpu_custom_call.1} parent=1 // pred_check_branch
      %61 = sbr.rel (0) target = $region33
    $region32: #{tpu_custom_call.1} parent=1 // pred_region
      %63 = dma.done [#allocation7], 64
    $region33: #{tpu_custom_call.1} parent=1 // pred_fallthru
      _
    // Predicated region
    $region34: #{tpu_custom_call.1} parent=1 // pred_check
      _
    $region35: #{tpu_custom_call.1} parent=1 // pred_check_branch
      %65 = sbr.rel (0) target = $region37
    $region36: #{tpu_custom_call.1} parent=1 // pred_region
      %67 = dma.done [#allocation7], 2048
    $region37: #{tpu_custom_call.1} parent=1 // pred_fallthru
      _
    %v68 = vld [vmem:[#allocation3] sm:$0xf]
    %v69 = vld [vmem:[#allocation6] sm:$0xf]
    %v70 = vld [vmem:[%s2] sm:$0x1]
    %v72 = vperm.slane %v70, 0
    %v74 = vmul.f32 %v68, %v72
    %v75 = vld [vmem:[%s3] sm:$0x1]
    %v77 = vperm.slane %v75, 0
    %v79 = vmul.f32 %v69, %v77
    %v80 = vadd.f32 %v74, %v79
    %v81 = vld [vmem:[#allocation8] sm:$0xff]
    %v82 = vld [vmem:[#allocation8 + $0x8] sm:$0xff]
    %v83 = vld [vmem:[#allocation8 + $0x10] sm:$0xff]
    %v84 = vld [vmem:[#allocation8 + $0x18] sm:$0xff]
    %v85 = vld [vmem:[#allocation8 + $0x20] sm:$0xff]
    %v86 = vld [vmem:[#allocation8 + $0x28] sm:$0xff]
    %v87 = vld [vmem:[#allocation8 + $0x30] sm:$0xff]
    %v88 = vld [vmem:[#allocation8 + $0x38] sm:$0xff]
    %v89 = vld [vmem:[#allocation8 + $0x40] sm:$0xff]
    %v90 = vld [vmem:[#allocation8 + $0x48] sm:$0xff]
    %v91 = vld [vmem:[#allocation8 + $0x50] sm:$0xff]
    %v92 = vld [vmem:[#allocation8 + $0x58] sm:$0xff]
    %v93 = vld [vmem:[#allocation8 + $0x60] sm:$0xff]
    %v94 = vld [vmem:[#allocation8 + $0x68] sm:$0xff]
    %v95 = vld [vmem:[#allocation8 + $0x70] sm:$0xff]
    %v96 = vld [vmem:[#allocation8 + $0x78] sm:$0xff]
    %s97 = sld [smem:[#allocation2]]
    %v98 = vstv %s97
    %99 = vmatpush.msra.mxu0 %v96
    %100 = vmatpush.msra.mxu0 %v95
    %101 = vmatpush.msra.mxu0 %v94
    %102 = vmatpush.msra.mxu0 %v93
    %103 = vmatpush.msra.mxu0 %v92
    %104 = vmatpush.msra.mxu0 %v91
    %105 = vmatpush.msra.mxu0 %v90
    %106 = vmatpush.msra.mxu0 %v89
    %107 = vmatpush.msra.mxu0 %v88
    %108 = vmatpush.msra.mxu0 %v87
    %109 = vmatpush.msra.mxu0 %v86
    %110 = vmatpush.msra.mxu0 %v85
    %111 = vmatpush.msra.mxu0 %v84
    %112 = vmatpush.msra.mxu0 %v83
    %113 = vmatpush.msra.mxu0 %v82
    %114 = vmatpush.msra.mxu0 %v81
    %115 = vmatmul.f32.gmra.mxu0 %v80
    %v116 = vpop.f32.mrf.mxu0
    %v117 = vadd.f32 %v98, %v116
    %118 = vdwg.mxu0
    %v119 = vxor.u32 %v117, 2147483648
    %v120 = vmul.f32 %v119, 1.442695
    %v121 = vpow.pop %v120
    %v122 = vadd.f32 %v121, 1.0
    %v123 = vrcp.pop %v122
    %v124 = vmul.f32 %v122, %v123
    %v125 = vsub.f32 1.0, %v124
    %v126 = vmul.f32 %v123, %v125
    %v127 = vadd.f32 %v123, %v126
    %vm128 = vweird.f32 %v122
    %vm129 = vweird.f32 %v123
    %vm130 = vmor %vm128, %vm129
    %v131 = vsel %vm130, %v123, %v127
    %v132 = vand.u32 2147483647, %v122
    %vm133 = vcmp.eq.f32.partialorder %v132, 8.507059e+37
    %v134 = vand.u32 %v122, 2147483648
    %v135 = vor.u32 1.1754944e-38, %v134
    %v136 = vsel %vm133, %v135, %v131
    %v137 = vmul.f32 1.0, %v136
    %v138 = vsub.f32 %v68, %v69
    %v139 = vmul.f32 %v137, %v138
    %v140 = vadd.f32 %v69, %v139
    %141 = vst [vmem:[#allocation9] sm:$0xf] %v140
    // Predicated region
    $region38: #{tpu_custom_call.1} parent=1 // pred_check
      _
    $region39: #{tpu_custom_call.1} parent=1 // pred_check_branch
      %143 = sbr.rel (0) target = $region41
    $region40: #{tpu_custom_call.1} parent=1 // pred_region
      %145 = vsyncadd [#allocation5], 0
      %s147 = sshll.u32 [#allocation9], 4
      %s148 = int_to_ptr.vmem [resolvable:$true] %s147
      %s149 = sshll.u32 %s6, 4
      %s150 = int_to_ptr.hbm [resolvable:$true] %s149
      %152 = dma.vmem_to_hbm [thread:$0]  %s148, 64, %s150, [#allocation5]
    $region41: #{tpu_custom_call.1} parent=1 // pred_fallthru
      _
    // Predicated region
    $region42: #{tpu_custom_call.1} parent=1 // pred_check
      _
    $region43: #{tpu_custom_call.1} parent=1 // pred_check_branch
      %154 = sbr.rel (0) target = $region45
    $region44: #{tpu_custom_call.1} parent=1 // pred_region
      %156 = dma.done [#allocation5], 64
    $region45: #{tpu_custom_call.1} parent=1 // pred_fallthru
      _
    %157 = vsyncpa [#allocation4], 1
    %158 = vsyncpa [#allocation7], 1
    %159 = vsyncpa [#allocation5], 1

</llo_original>
